<compile_context>
chip_gen: v7x
topology: tpu7x:2x2x1
jax: 0.10.0
libtpu: 0.0.40
codegen_flags: <defaults>
</compile_context>

<pallas_src>
import functools
import math

import jax
import jax.numpy as jnp
from jax.experimental import pallas as pl
from jax.experimental.pallas import tpu as pltpu


def _round_up(x: int, m: int) -> int:
    return ((x + m - 1) // m) * m


def _elistnn_kernel(a1_ref, msgs_ref, a2_ref, eh_ref, node_i_ref,
                    wr_ref, bias_ref, out_ref, acc_ref, *, k_node, k_edge):
    """Grid = (row tiles, shared reduction steps).  k_node / k_edge are the
    number of reduction steps that carry A1-columns / A2-columns respectively
    (the reduction axis is max(k_node, k_edge) steps long)."""
    k = pl.program_id(1)
    nk = pl.num_programs(1)

    @pl.when(k == 0)
    def _init():
        acc_ref[...] = jnp.zeros_like(acc_ref)

    # --- node-message aggregation: acc += A1 @ (node @ W_node), bf16 MXU -----
    @pl.when(k < k_node)
    def _node_agg():
        acc_ref[...] += jnp.dot(a1_ref[...], msgs_ref[...],
                                preferred_element_type=jnp.float32)

    # --- edge aggregation: acc += A2 @ relu(edge @ W_edge), bf16 MXU ---------
    @pl.when(k < k_edge)
    def _edge_agg():
        acc_ref[...] += jnp.dot(a2_ref[...], eh_ref[...],
                                preferred_element_type=jnp.float32)

    # --- finalize: add root transform + bias, store lane-dense ---------------
    @pl.when(k == nk - 1)
    def _finalize():
        root_out = jnp.dot(node_i_ref[...], wr_ref[...],
                           preferred_element_type=jnp.float32)
        out_ref[...] = (acc_ref[...] + root_out
                        + bias_ref[...]).astype(out_ref.dtype)


def elistnn_conv(node_mat, edge_mat, e_list, w_node, w_edge, w_root, bias,
                 *, tm=512, tk=2048):
    """node_mat: [N, C_in], edge_mat: [E, C_edge], e_list: [2, E] int32."""
    N, c_in = node_mat.shape
    E, c_edge = edge_mat.shape
    c_out = w_node.shape[1]
    f32 = jnp.float32
    bf16 = jnp.bfloat16

    # ---- tile sizes respecting the (8, 128) layout rules ---------------------
    tm = min(_round_up(tm, 8), _round_up(N, 8))                  # row tile
    if N > 8 and _round_up(N, tm) // tm < 2:
        # Ensure >= 2 row tiles so v7x's second TensorCore gets work.
        tm = _round_up((N + 1) // 2, 8)
    tk = min(_round_up(tk, 128),
             max(_round_up(N, 128), _round_up(E, 128)))          # reduction tile

    n_rows = _round_up(N, tm)          # output / A1-row / A2-row padding
    n_red = _round_up(N, tk)           # A1-column (node reduction) padding
    e_red = _round_up(E, tk)           # A2-column (edge reduction) padding
    c_pad = _round_up(c_out, 128)      # lane-dense output width

    k_node = n_red // tk
    k_edge = e_red // tk
    num_i = n_rows // tm
    num_k = max(k_node, k_edge)

    # ---- dense adjacency operands in bf16 ------------------------------------
    # NOTE: bf16 counts are exact only for edge multiplicities <= 256.
    src, dst = e_list[0], e_list[1]
    a1 = (jnp.zeros((n_rows, n_red), f32)
          .at[src, dst].add(1.0)).astype(bf16)
    a2 = (jnp.zeros((n_rows, e_red), f32)
          .at[dst, jnp.arange(E)].add(1.0)).astype(bf16)

    # ---- tiny feature transforms precomputed once, streamed lane-dense bf16 --
    msgs = (jnp.zeros((n_red, c_pad), f32)
            .at[:N, :c_out].set(node_mat.astype(f32) @ w_node.astype(f32))
            ).astype(bf16)
    e_hidden = (jnp.zeros((e_red, c_pad), f32)
                .at[:E, :c_out].set(
                    jnp.maximum(edge_mat.astype(f32) @ w_edge.astype(f32), 0.0))
                ).astype(bf16)

    node_i = jnp.zeros((n_rows, c_in), f32).at[:N].set(node_mat.astype(f32))
    wr = jnp.zeros((c_in, c_pad), f32).at[:, :c_out].set(w_root.astype(f32))
    b = jnp.zeros((1, c_pad), f32).at[0, :c_out].set(bias.astype(f32))

    kernel = functools.partial(_elistnn_kernel, k_node=k_node, k_edge=k_edge)

    # Advisory cost estimate for the XLA scheduler.
    flops = (2 * n_rows * n_red * c_pad          # A1 @ msgs
             + 2 * n_rows * e_red * c_pad        # A2 @ e_hidden
             + 2 * n_rows * c_in * c_pad)        # root transform
    bytes_accessed = (a1.size * 2 + a2.size * 2
                      + num_i * (msgs.size + e_hidden.size) * 2
                      + node_i.size * 4 + (wr.size + b.size) * 4
                      + n_rows * c_pad * 4)

    out = pl.pallas_call(
        kernel,
        out_shape=jax.ShapeDtypeStruct((n_rows, c_pad), jnp.float32),
        grid_spec=pltpu.PrefetchScalarGridSpec(
            num_scalar_prefetch=0,
            grid=(num_i, num_k),
            in_specs=[
                # A1 row tile x reduction tile (bf16); block index clamped when
                # the node reduction is shorter than the shared reduction axis
                # (no re-DMA since the block index repeats; pl.when guards it).
                pl.BlockSpec((tm, tk),
                             lambda i, k: (i, jnp.minimum(k, k_node - 1))),
                # msgs tiles (lane-dense bf16, reduction-tiled).
                pl.BlockSpec((tk, c_pad),
                             lambda i, k: (jnp.minimum(k, k_node - 1), 0)),
                # A2 row tile x reduction tile (bf16).
                pl.BlockSpec((tm, tk),
                             lambda i, k: (i, jnp.minimum(k, k_edge - 1))),
                # e_hidden tiles (lane-dense bf16, reduction-tiled).
                pl.BlockSpec((tk, c_pad),
                             lambda i, k: (jnp.minimum(k, k_edge - 1), 0)),
                # node rows of the current output tile (root transform, f32).
                pl.BlockSpec((tm, c_in), lambda i, k: (i, 0)),
                # W_root / bias: single resident blocks.
                pl.BlockSpec((c_in, c_pad), lambda i, k: (0, 0)),
                pl.BlockSpec((1, c_pad), lambda i, k: (0, 0)),
            ],
            out_specs=pl.BlockSpec((tm, c_pad), lambda i, k: (i, 0)),
            scratch_shapes=[
                pltpu.VMEM((tm, c_pad), jnp.float32),   # f32 accumulator
            ],
        ),
        compiler_params=pltpu.CompilerParams(
            dimension_semantics=("parallel", "arbitrary"),
            vmem_limit_bytes=32 * 1024 * 1024),
        cost_estimate=pl.CostEstimate(flops=flops, transcendentals=0,
                                      bytes_accessed=bytes_accessed),
    )(a1, msgs, a2, e_hidden, node_i, wr, b)

    return out[:N, :c_out]


def elistnn_conv_ref(node_mat, edge_mat, e_list, w_node, w_edge, w_root, bias):
    """Pure-JAX reference mirroring the PyTorch forward (segment-sum scatter)."""
    N = node_mat.shape[0]
    msgs = node_mat @ w_node
    sum_msgs = jnp.zeros((N, w_node.shape[1])).at[e_list[0]].add(msgs[e_list[1]])
    e_hidden = jnp.maximum(edge_mat @ w_edge, 0.0)
    e_compress = jnp.zeros((N, w_edge.shape[1])).at[e_list[1]].add(e_hidden)
    root_info = node_mat @ w_root
    return sum_msgs + e_compress + root_info + bias[None, :]


if __name__ == "__main__":
    # Small, module-consistent shapes.
    N = 16            # number of nodes
    E = 32            # number of edges
    in_channels = 8
    edge_channels = 4
    out_channels = 16

    key = jax.random.PRNGKey(0)
    (k_nodef, k_edgef, k_src, k_dst,
     k_wn, k_we, k_wr, k_b) = jax.random.split(key, 8)

    node_mat = jax.random.normal(k_nodef, (N, in_channels), jnp.float32)
    edge_mat = jax.random.normal(k_edgef, (E, edge_channels), jnp.float32)
    e_list = jnp.stack([
        jax.random.randint(k_src, (E,), 0, N, jnp.int32),
        jax.random.randint(k_dst, (E,), 0, N, jnp.int32),
    ], axis=0)                                                  # [2, E]

    # Deterministic parameter init matching reset_parameters().
    node_stdv = 1.0 / math.sqrt(out_channels)
    e1_stdv = 1.0 / math.sqrt(out_channels)
    w_node = jax.random.uniform(k_wn, (in_channels, out_channels), jnp.float32,
                                -node_stdv, node_stdv)
    w_edge = jax.random.uniform(k_we, (edge_channels, out_channels), jnp.float32,
                                -e1_stdv, e1_stdv)
    w_root = jax.random.uniform(k_wr, (in_channels, out_channels), jnp.float32,
                                -node_stdv, node_stdv)
    bias = jax.random.uniform(k_b, (out_channels,), jnp.float32,
                              -node_stdv, node_stdv)

    out = elistnn_conv(node_mat, edge_mat, e_list, w_node, w_edge, w_root, bias)
    out = jax.block_until_ready(out)

    ref = elistnn_conv_ref(node_mat, edge_mat, e_list, w_node, w_edge, w_root, bias)
    assert out.shape == (N, out_channels)
    # bf16 MXU path for the big contractions -> tolerance-based check.
    assert jnp.allclose(out, ref, atol=1e-2, rtol=1e-2), "mismatch vs JAX reference"

    print("KERNEL_OK")
</pallas_src>

<mosaic_0001>
module attributes {stable_mosaic.version = 11 : i64} {
  func.func @_elistnn_kernel(%arg0: i32, %arg1: i32, %arg2: memref<8x128xbf16, #tpu.memory_space<vmem>>, %arg3: memref<128x128xbf16, #tpu.memory_space<vmem>>, %arg4: memref<8x128xbf16, #tpu.memory_space<vmem>>, %arg5: memref<128x128xbf16, #tpu.memory_space<vmem>>, %arg6: memref<8x8xf32, #tpu.memory_space<vmem>>, %arg7: memref<8x128xf32, #tpu.memory_space<vmem>>, %arg8: memref<1x128xf32, #tpu.memory_space<vmem>>, %arg9: memref<8x128xf32, #tpu.memory_space<vmem>>, %arg10: memref<8x128xf32, #tpu.memory_space<vmem>>) attributes {dimension_semantics = [#tpu.dimension_semantics<parallel>, #tpu.dimension_semantics<arbitrary>], iteration_bounds = array<i64: 2, 1>, scalar_prefetch = 0 : i64, scratch_operands = 1 : i64, tpu.core_type = #tpu.core_type<tc>, window_params = [{transform_indices = @transform_0, window_bounds = array<i64: 8, 128>}, {transform_indices = @transform_1, window_bounds = array<i64: 128, 128>}, {transform_indices = @transform_2, window_bounds = array<i64: 8, 128>}, {transform_indices = @transform_3, window_bounds = array<i64: 128, 128>}, {transform_indices = @transform_4, window_bounds = array<i64: 8, 8>}, {pipeline_mode = #tpu.pipeline_mode<synchronous>, transform_indices = @transform_5, window_bounds = array<i64: 8, 128>}, {pipeline_mode = #tpu.pipeline_mode<synchronous>, transform_indices = @transform_6, window_bounds = array<i64: 1, 128>}, {transform_indices = @transform_7, window_bounds = array<i64: 8, 128>}]} {
    %c0_i32 = arith.constant 0 : i32
    %0 = arith.cmpi eq, %arg1, %c0_i32 : i32
    %1 = arith.extui %0 : i1 to i32
    %c0_i32_0 = arith.constant 0 : i32
    %2 = arith.cmpi ne, %1, %c0_i32_0 : i32
    scf.if %2 {
      %cst = arith.constant 0.000000e+00 : f32
      %12 = vector.broadcast %cst : f32 to vector<8x128xf32>
      %c0 = arith.constant 0 : index
      %c0_6 = arith.constant 0 : index
      %13 = vector.load %arg10[%c0, %c0_6] : memref<8x128xf32, #tpu.memory_space<vmem>>, vector<8x128xf32>
      tpu.vector_store %arg10[%c0, %c0_6], %12 {strides = array<i32>} : memref<8x128xf32, #tpu.memory_space<vmem>>, vector<8x128xf32>,
    } else {
    }
    %c1_i32 = arith.constant 1 : i32
    %3 = arith.cmpi slt, %arg1, %c1_i32 : i32
    %4 = arith.extui %3 : i1 to i32
    %c0_i32_1 = arith.constant 0 : i32
    %5 = arith.cmpi ne, %4, %c0_i32_1 : i32
    scf.if %5 {
      %c0 = arith.constant 0 : index
      %c0_6 = arith.constant 0 : index
      %12 = vector.load %arg10[%c0, %c0_6] : memref<8x128xf32, #tpu.memory_space<vmem>>, vector<8x128xf32>
      %c0_7 = arith.constant 0 : index
      %c0_8 = arith.constant 0 : index
      %13 = vector.load %arg2[%c0_7, %c0_8] : memref<8x128xbf16, #tpu.memory_space<vmem>>, vector<8x128xbf16>
      %c0_9 = arith.constant 0 : index
      %c0_10 = arith.constant 0 : index
      %14 = vector.load %arg3[%c0_9, %c0_10] : memref<128x128xbf16, #tpu.memory_space<vmem>>, vector<128x128xbf16>
      %cst = arith.constant dense<0.000000e+00> : vector<8x128xf32>
      %15 = tpu.matmul %13, %14, %cst {dimension_numbers = #tpu.dot_dimension_numbers<[1], [0], [0], [1], [0, 0, 1, 1], [], []>} : vector<8x128xbf16>, vector<128x128xbf16>, vector<8x128xf32> -> vector<8x128xf32>
      %16 = arith.addf %12, %15 : vector<8x128xf32>
      %c0_11 = arith.constant 0 : index
      %c0_12 = arith.constant 0 : index
      %17 = vector.load %arg10[%c0_11, %c0_12] : memref<8x128xf32, #tpu.memory_space<vmem>>, vector<8x128xf32>
      tpu.vector_store %arg10[%c0_11, %c0_12], %16 {strides = array<i32>} : memref<8x128xf32, #tpu.memory_space<vmem>>, vector<8x128xf32>,
    } else {
    }
    %c1_i32_2 = arith.constant 1 : i32
    %6 = arith.cmpi slt, %arg1, %c1_i32_2 : i32
    %7 = arith.extui %6 : i1 to i32
    %c0_i32_3 = arith.constant 0 : i32
    %8 = arith.cmpi ne, %7, %c0_i32_3 : i32
    scf.if %8 {
      %c0 = arith.constant 0 : index
      %c0_6 = arith.constant 0 : index
      %12 = vector.load %arg10[%c0, %c0_6] : memref<8x128xf32, #tpu.memory_space<vmem>>, vector<8x128xf32>
      %c0_7 = arith.constant 0 : index
      %c0_8 = arith.constant 0 : index
      %13 = vector.load %arg4[%c0_7, %c0_8] : memref<8x128xbf16, #tpu.memory_space<vmem>>, vector<8x128xbf16>
      %c0_9 = arith.constant 0 : index
      %c0_10 = arith.constant 0 : index
      %14 = vector.load %arg5[%c0_9, %c0_10] : memref<128x128xbf16, #tpu.memory_space<vmem>>, vector<128x128xbf16>
      %cst = arith.constant dense<0.000000e+00> : vector<8x128xf32>
      %15 = tpu.matmul %13, %14, %cst {dimension_numbers = #tpu.dot_dimension_numbers<[1], [0], [0], [1], [0, 0, 1, 1], [], []>} : vector<8x128xbf16>, vector<128x128xbf16>, vector<8x128xf32> -> vector<8x128xf32>
      %16 = arith.addf %12, %15 : vector<8x128xf32>
      %c0_11 = arith.constant 0 : index
      %c0_12 = arith.constant 0 : index
      %17 = vector.load %arg10[%c0_11, %c0_12] : memref<8x128xf32, #tpu.memory_space<vmem>>, vector<8x128xf32>
      tpu.vector_store %arg10[%c0_11, %c0_12], %16 {strides = array<i32>} : memref<8x128xf32, #tpu.memory_space<vmem>>, vector<8x128xf32>,
    } else {
    }
    %c0_i32_4 = arith.constant 0 : i32
    %9 = arith.cmpi eq, %arg1, %c0_i32_4 : i32
    %10 = arith.extui %9 : i1 to i32
    %c0_i32_5 = arith.constant 0 : i32
    %11 = arith.cmpi ne, %10, %c0_i32_5 : i32
    scf.if %11 {
      %c0 = arith.constant 0 : index
      %c0_6 = arith.constant 0 : index
      %12 = vector.load %arg6[%c0, %c0_6] : memref<8x8xf32, #tpu.memory_space<vmem>>, vector<8x8xf32>
      %c0_7 = arith.constant 0 : index
      %c0_8 = arith.constant 0 : index
      %13 = vector.load %arg7[%c0_7, %c0_8] : memref<8x128xf32, #tpu.memory_space<vmem>>, vector<8x128xf32>
      %cst = arith.constant dense<0.000000e+00> : vector<8x128xf32>
      %14 = tpu.matmul %12, %13, %cst {dimension_numbers = #tpu.dot_dimension_numbers<[1], [0], [0], [1], [0, 0, 1, 1], [], []>} : vector<8x8xf32>, vector<8x128xf32>, vector<8x128xf32> -> vector<8x128xf32>
      %c0_9 = arith.constant 0 : index
      %c0_10 = arith.constant 0 : index
      %15 = vector.load %arg10[%c0_9, %c0_10] : memref<8x128xf32, #tpu.memory_space<vmem>>, vector<8x128xf32>
      %16 = arith.addf %15, %14 : vector<8x128xf32>
      %c0_11 = arith.constant 0 : index
      %c0_12 = arith.constant 0 : index
      %17 = vector.load %arg8[%c0_11, %c0_12] : memref<1x128xf32, #tpu.memory_space<vmem>>, vector<1x128xf32>
      %18 = vector.broadcast %17 : vector<1x128xf32> to vector<8x128xf32>
      %19 = arith.addf %16, %18 : vector<8x128xf32>
      %c0_13 = arith.constant 0 : index
      %c0_14 = arith.constant 0 : index
      %20 = vector.load %arg9[%c0_13, %c0_14] : memref<8x128xf32, #tpu.memory_space<vmem>>, vector<8x128xf32>
      tpu.vector_store %arg9[%c0_13, %c0_14], %19 {strides = array<i32>} : memref<8x128xf32, #tpu.memory_space<vmem>>, vector<8x128xf32>,
    } else {
    }
    return
  }
  func.func @transform_0(%arg0: i32, %arg1: i32) -> (i32, i32) {
    %c0_i32 = arith.constant 0 : i32
    %0 = arith.minsi %arg1, %c0_i32 : i32
    %c0_i32_0 = arith.constant 0 : i32
    return %arg0, %0 : i32, i32
  }
  func.func @transform_1(%arg0: i32, %arg1: i32) -> (i32, i32) {
    %c0_i32 = arith.constant 0 : i32
    %0 = arith.minsi %arg1, %c0_i32 : i32
    %c0_i32_0 = arith.constant 0 : i32
    %c0_i32_1 = arith.constant 0 : i32
    return %0, %c0_i32_0 : i32, i32
  }
  func.func @transform_2(%arg0: i32, %arg1: i32) -> (i32, i32) {
    %c0_i32 = arith.constant 0 : i32
    %0 = arith.minsi %arg1, %c0_i32 : i32
    %c0_i32_0 = arith.constant 0 : i32
    return %arg0, %0 : i32, i32
  }
  func.func @transform_3(%arg0: i32, %arg1: i32) -> (i32, i32) {
    %c0_i32 = arith.constant 0 : i32
    %0 = arith.minsi %arg1, %c0_i32 : i32
    %c0_i32_0 = arith.constant 0 : i32
    %c0_i32_1 = arith.constant 0 : i32
    return %0, %c0_i32_0 : i32, i32
  }
  func.func @transform_4(%arg0: i32, %arg1: i32) -> (i32, i32) {
    %c0_i32 = arith.constant 0 : i32
    %c0_i32_0 = arith.constant 0 : i32
    return %arg0, %c0_i32 : i32, i32
  }
  func.func @transform_5(%arg0: i32, %arg1: i32) -> (i32, i32) {
    %c0_i32 = arith.constant 0 : i32
    %c0_i32_0 = arith.constant 0 : i32
    %c0_i32_1 = arith.constant 0 : i32
    return %c0_i32, %c0_i32_0 : i32, i32
  }
  func.func @transform_6(%arg0: i32, %arg1: i32) -> (i32, i32) {
    %c0_i32 = arith.constant 0 : i32
    %c0_i32_0 = arith.constant 0 : i32
    %c0_i32_1 = arith.constant 0 : i32
    return %c0_i32, %c0_i32_0 : i32, i32
  }
  func.func @transform_7(%arg0: i32, %arg1: i32) -> (i32, i32) {
    %c0_i32 = arith.constant 0 : i32
    %c0_i32_0 = arith.constant 0 : i32
    return %arg0, %c0_i32 : i32, i32
  }
}

</mosaic_0001>

<llo_original>
// kernel: tpu_custom_call.1
$region0: #{tpu_custom_call.1}
  #allocation0 [shape = 'u32[]', space=smem, size = 0x4, offset = 0x4, fixed_abs, tag = 'smem constant byte address 0x4 - core index']
  #allocation1 [shape = 'u32[144,128]{1,0:T(1,128)}', space=vmem, size = 0x12000, scoped, tag = 'internal scratch']
  #allocation2 [shape = 'f32[8,128]{1,0:T(8,128)}', space=vmem, size = 0x1000, scoped, tag = 'scratch operand']
  %s0 = inlined_call_operand.vmem [shape: bf16[16,128], index: 0, kind: input, shape index: {}]
  %s1 = inlined_call_operand.hbm [shape: bf16[128,128], index: 1, kind: input, shape index: {}]
  %s2 = inlined_call_operand.vmem [shape: bf16[16,128], index: 2, kind: input, shape index: {}]
  %s3 = inlined_call_operand.hbm [shape: bf16[128,128], index: 3, kind: input, shape index: {}]
  %s4 = inlined_call_operand.vmem [shape: f32[16,8], index: 4, kind: input, shape index: {}]
  %s5 = inlined_call_operand.vmem [shape: f32[8,128], index: 5, kind: input, shape index: {}]
  %s6 = inlined_call_operand.vmem [shape: f32[1,128], index: 6, kind: input, shape index: {}]
  %s7 = inlined_call_operand.hbm [shape: f32[16,128], index: 7, kind: output, shape index: {}]
  %s8 = sld [smem:[#allocation0]]
  $region81: #{tpu_custom_call.1} parent=0
    _
  %s10 = ssub.s32 1, %s8
  %s11 = scalar_select 0, %s10, %s8
  $region1: #{tpu_custom_call.1} parent=0
    #allocation3 [shape = 'u8[32768]{0}', space=vmem, size = 0x8000, scoped, tag = 'input window, operand 1, single buffered']
    #allocation4 [shape = 's32[2]{0}', space=sflag, size = 0x8, scoped, tag = 'scoped memory for tpu_custom_call.1']
    #allocation5 [shape = 's32[2]{0}', space=sflag, size = 0x8, scoped, tag = 'scoped memory for tpu_custom_call.1']
    #allocation6 [shape = 'u8[32768]{0}', space=vmem, size = 0x8000, scoped, tag = 'input window, operand 3, single buffered']
    #allocation7 [shape = 's32[1]{0}', space=sflag, size = 0x4, scoped, tag = 'scoped memory for tpu_custom_call.1']
    #allocation8 [shape = 'u8[8192]{0}', space=vmem, size = 0x2000, scoped, tag = 'output window, operand 0']
    %12 = vsyncpa [#allocation4], 0
    %13 = vsyncpa [#allocation7], 0
    %14 = vsyncpa [#allocation5], 0
    %s15 = scalar_lea.sflag [#allocation5], 1
    %16 = vsyncpa %s15, 0
    loop: start=0, step=1, limit=4
    $region2: #{tpu_custom_call.1} parent=1 // loop_pre_header
      _
    $region3: #{tpu_custom_call.1} parent=1 // loop_header
      %s18 = sphi 0, %s22
      %p19 = scmp.ge.s32.totalorder %s18, 4
      %s25 = sphi 0, %s37
      %s26 = sphi 0, %s33
      %s27 = sphi 0, %s25
      %s28 = sphi 0, %s26
      %s29 = sphi 0, %s27
      %s30 = sphi 0, %s28
      %s46 = sphi 0, %s48
      %s49 = sphi 0, %s46
      %s50 = sphi 0, %s49
      %s66 = sphi 0, %s50
      %s76 = sphi 0, %s78
      %s79 = sphi 0, %s76
      %s80 = sphi 0, %s79
      %s96 = sphi 0, %s80
      %s108 = sphi 0, %s110
      %s111 = sphi 0, %s108
      %s112 = sphi 0, %s111
      %s128 = sphi 0, %s112
      %s138 = sphi 0, %s140
      %s141 = sphi 0, %s138
      %s142 = sphi 0, %s141
      %s158 = sphi 0, %s142
      %s164 = sphi 0, %s166
      %s167 = sphi 0, %s164
      %s168 = sphi 0, %s167
      %s184 = sphi 0, %s168
      %s188 = sphi 0, %s188
      %s190 = sphi 0, %s188
      %s191 = sphi 0, %s190
      %s205 = sphi 0, %s191
      %s209 = sphi 0, %s209
      %s211 = sphi 0, %s209
      %s212 = sphi 0, %s211
      %s226 = sphi 0, %s212
      %s232 = sphi 0, %s234
      %s235 = sphi 0, %s232
      %s236 = sphi 0, %s235
      %s252 = sphi 0, %s236
    $region4: #{tpu_custom_call.1} parent=1 // loop_header_branch
      %21 = sbr.rel (%p19) target = $region8
    $region5: #{tpu_custom_call.1} parent=1 // loop_body
      %s23 = ssub.s32 %s18, 1
      %s24 = ssub.s32 %s18, 2
      %s31 = sadd.s32 1, %s26
      %p32 = scmp.ge.s32.totalorder %s31, 1
      %s33 = scalar_select %p32, 0, %s31
      %s34 = sadd.s32 1, %s25
      %s35 = scalar_select %p32, %s34, %s25
      %p36 = scmp.ge.s32.totalorder %s35, 2
      %s37 = scalar_select %p36, 0, %s35
      %p38 = scmp.lt.s32.totalorder %s26, 0
      %s39 = scalar_select %p38, %s26, 0
      %p40 = scmp.lt.s32.totalorder %s33, 0
      %s41 = scalar_select %p40, %s33, 0
      %s42 = ssub.s32 %s25, %s37
      %s43 = ssub.s32 %s39, %s41
      %s44 = sor.u32 %s42, %s43
      %p45 = scmp.eq.s32.totalorder %s44, 0
      %s47 = sadd.s32 %s46, 1
      %s48 = scalar_select %p45, %s46, %s47
      %p51 = pneg %p45
      %p52 = scmp.eq.s32.totalorder %s18, 1
      %p53 = por %p51, %p52
      %p54 = scmp.ne.s32.totalorder %s46, %s49
      %p55 = scmp.eq.s32.totalorder %s18, 0
      %p56 = por %p54, %p55
      %p57 = scmp.ne.s32.totalorder %s46, %s49
      %p58 = scmp.eq.s32.totalorder %s23, 1
      %p59 = por %p57, %p58
      %p60 = scmp.ne.s32.totalorder %s49, %s50
      %p61 = scmp.eq.s32.totalorder %s23, 0
      %p62 = por %p60, %p61
      %p63 = scmp.ne.s32.totalorder %s49, %s50
      %p64 = scmp.eq.s32.totalorder %s24, 1
      %p65 = por %p63, %p64
      %p67 = scmp.ne.s32.totalorder %s50, %s66
      %p68 = scmp.eq.s32.totalorder %s24, 0
      %p69 = por %p67, %p68
      %p70 = scmp.lt.s32.totalorder %s26, 0
      %s71 = scalar_select %p70, %s26, 0
      %p72 = scmp.lt.s32.totalorder %s33, 0
      %s73 = scalar_select %p72, %s33, 0
      %s74 = ssub.s32 %s71, %s73
      %p75 = scmp.eq.s32.totalorder %s74, 0
      %s77 = sadd.s32 %s76, 1
      %s78 = scalar_select %p75, %s76, %s77
      %p81 = pneg %p75
      %p82 = scmp.eq.s32.totalorder %s18, 1
      %p83 = por %p81, %p82
      %p84 = scmp.ne.s32.totalorder %s76, %s79
      %p85 = scmp.eq.s32.totalorder %s18, 0
      %p86 = por %p84, %p85
      %p87 = scmp.ne.s32.totalorder %s76, %s79
      %p88 = scmp.eq.s32.totalorder %s23, 1
      %p89 = por %p87, %p88
      %p90 = scmp.ne.s32.totalorder %s79, %s80
      %p91 = scmp.eq.s32.totalorder %s23, 0
      %p92 = por %p90, %p91
      %p93 = scmp.ne.s32.totalorder %s79, %s80
      %p94 = scmp.eq.s32.totalorder %s24, 1
      %p95 = por %p93, %p94
      %p97 = scmp.ne.s32.totalorder %s80, %s96
      %p98 = scmp.eq.s32.totalorder %s24, 0
      %p99 = por %p97, %p98
      %p100 = scmp.lt.s32.totalorder %s26, 0
      %s101 = scalar_select %p100, %s26, 0
      %p102 = scmp.lt.s32.totalorder %s33, 0
      %s103 = scalar_select %p102, %s33, 0
      %s104 = ssub.s32 %s25, %s37
      %s105 = ssub.s32 %s101, %s103
      %s106 = sor.u32 %s104, %s105
      %p107 = scmp.eq.s32.totalorder %s106, 0
      %s109 = sadd.s32 %s108, 1
      %s110 = scalar_select %p107, %s108, %s109
      %p113 = pneg %p107
      %p114 = scmp.eq.s32.totalorder %s18, 1
      %p115 = por %p113, %p114
      %p116 = scmp.ne.s32.totalorder %s108, %s111
      %p117 = scmp.eq.s32.totalorder %s18, 0
      %p118 = por %p116, %p117
      %p119 = scmp.ne.s32.totalorder %s108, %s111
      %p120 = scmp.eq.s32.totalorder %s23, 1
      %p121 = por %p119, %p120
      %p122 = scmp.ne.s32.totalorder %s111, %s112
      %p123 = scmp.eq.s32.totalorder %s23, 0
      %p124 = por %p122, %p123
      %p125 = scmp.ne.s32.totalorder %s111, %s112
      %p126 = scmp.eq.s32.totalorder %s24, 1
      %p127 = por %p125, %p126
      %p129 = scmp.ne.s32.totalorder %s112, %s128
      %p130 = scmp.eq.s32.totalorder %s24, 0
      %p131 = por %p129, %p130
      %p132 = scmp.lt.s32.totalorder %s26, 0
      %s133 = scalar_select %p132, %s26, 0
      %p134 = scmp.lt.s32.totalorder %s33, 0
      %s135 = scalar_select %p134, %s33, 0
      %s136 = ssub.s32 %s133, %s135
      %p137 = scmp.eq.s32.totalorder %s136, 0
      %s139 = sadd.s32 %s138, 1
      %s140 = scalar_select %p137, %s138, %s139
      %p143 = pneg %p137
      %p144 = scmp.eq.s32.totalorder %s18, 1
      %p145 = por %p143, %p144
      %p146 = scmp.ne.s32.totalorder %s138, %s141
      %p147 = scmp.eq.s32.totalorder %s18, 0
      %p148 = por %p146, %p147
      %p149 = scmp.ne.s32.totalorder %s138, %s141
      %p150 = scmp.eq.s32.totalorder %s23, 1
      %p151 = por %p149, %p150
      %p152 = scmp.ne.s32.totalorder %s141, %s142
      %p153 = scmp.eq.s32.totalorder %s23, 0
      %p154 = por %p152, %p153
      %p155 = scmp.ne.s32.totalorder %s141, %s142
      %p156 = scmp.eq.s32.totalorder %s24, 1
      %p157 = por %p155, %p156
      %p159 = scmp.ne.s32.totalorder %s142, %s158
      %p160 = scmp.eq.s32.totalorder %s24, 0
      %p161 = por %p159, %p160
      %s162 = ssub.s32 %s25, %s37
      %p163 = scmp.eq.s32.totalorder %s162, 0
      %s165 = sadd.s32 %s164, 1
      %s166 = scalar_select %p163, %s164, %s165
      %p169 = pneg %p163
      %p170 = scmp.eq.s32.totalorder %s18, 1
      %p171 = por %p169, %p170
      %p172 = scmp.ne.s32.totalorder %s164, %s167
      %p173 = scmp.eq.s32.totalorder %s18, 0
      %p174 = por %p172, %p173
      %p175 = scmp.ne.s32.totalorder %s164, %s167
      %p176 = scmp.eq.s32.totalorder %s23, 1
      %p177 = por %p175, %p176
      %p178 = scmp.ne.s32.totalorder %s167, %s168
      %p179 = scmp.eq.s32.totalorder %s23, 0
      %p180 = por %p178, %p179
      %p181 = scmp.ne.s32.totalorder %s167, %s168
      %p182 = scmp.eq.s32.totalorder %s24, 1
      %p183 = por %p181, %p182
      %p185 = scmp.ne.s32.totalorder %s168, %s184
      %p186 = scmp.eq.s32.totalorder %s24, 0
      %p187 = por %p185, %p186
      %s189 = sadd.s32 %s188, 1
      %p192 = scmp.eq.s32.totalorder %s18, 1
      %p193 = scmp.ne.s32.totalorder %s188, %s190
      %p194 = scmp.eq.s32.totalorder %s18, 0
      %p195 = por %p193, %p194
      %p196 = scmp.ne.s32.totalorder %s188, %s190
      %p197 = scmp.eq.s32.totalorder %s23, 1
      %p198 = por %p196, %p197
      %p199 = scmp.ne.s32.totalorder %s190, %s191
      %p200 = scmp.eq.s32.totalorder %s23, 0
      %p201 = por %p199, %p200
      %p202 = scmp.ne.s32.totalorder %s190, %s191
      %p203 = scmp.eq.s32.totalorder %s24, 1
      %p204 = por %p202, %p203
      %p206 = scmp.ne.s32.totalorder %s191, %s205
      %p207 = scmp.eq.s32.totalorder %s24, 0
      %p208 = por %p206, %p207
      %s210 = sadd.s32 %s209, 1
      %p213 = scmp.eq.s32.totalorder %s18, 1
      %p214 = scmp.ne.s32.totalorder %s209, %s211
      %p215 = scmp.eq.s32.totalorder %s18, 0
      %p216 = por %p214, %p215
      %p217 = scmp.ne.s32.totalorder %s209, %s211
      %p218 = scmp.eq.s32.totalorder %s23, 1
      %p219 = por %p217, %p218
      %p220 = scmp.ne.s32.totalorder %s211, %s212
      %p221 = scmp.eq.s32.totalorder %s23, 0
      %p222 = por %p220, %p221
      %p223 = scmp.ne.s32.totalorder %s211, %s212
      %p224 = scmp.eq.s32.totalorder %s24, 1
      %p225 = por %p223, %p224
      %p227 = scmp.ne.s32.totalorder %s212, %s226
      %p228 = scmp.eq.s32.totalorder %s24, 0
      %p229 = por %p227, %p228
      %s230 = ssub.s32 %s25, %s37
      %p231 = scmp.eq.s32.totalorder %s230, 0
      %s233 = sadd.s32 %s232, 1
      %s234 = scalar_select %p231, %s232, %s233
      %p237 = pneg %p231
      %p238 = scmp.eq.s32.totalorder %s18, 1
      %p239 = por %p237, %p238
      %p240 = scmp.ne.s32.totalorder %s232, %s235
      %p241 = scmp.eq.s32.totalorder %s18, 0
      %p242 = por %p240, %p241
      %p243 = scmp.ne.s32.totalorder %s232, %s235
      %p244 = scmp.eq.s32.totalorder %s23, 1
      %p245 = por %p243, %p244
      %p246 = scmp.ne.s32.totalorder %s235, %s236
      %p247 = scmp.eq.s32.totalorder %s23, 0
      %p248 = por %p246, %p247
      %p249 = scmp.ne.s32.totalorder %s235, %s236
      %p250 = scmp.eq.s32.totalorder %s24, 1
      %p251 = por %p249, %p250
      %p253 = scmp.ne.s32.totalorder %s236, %s252
      %p254 = scmp.eq.s32.totalorder %s24, 0
      %p255 = por %p253, %p254
      %p256 = scmp.le.s32.totalorder 1, %s18
      %p257 = scmp.lt.s32.totalorder %s18, 3
      %p258 = pnand %p256, %p257
      %p259 = pneg %p258
      // Predicated region
      $region9: #{tpu_custom_call.1} parent=5 // pred_check
        _
      $region10: #{tpu_custom_call.1} parent=5 // pred_check_branch
        %261 = sbr.rel (%p258) target = $region12
      $region11: #{tpu_custom_call.1} parent=5 // pred_region
        %s262 = ssub.s32 %s18, 1
        // Predicated region
        $region13: #{tpu_custom_call.1} parent=11 // pred_check
          %p263 = pneg %p92
        $region14: #{tpu_custom_call.1} parent=11 // pred_check_branch
          %265 = sbr.rel (%p263) target = $region16
        $region15: #{tpu_custom_call.1} parent=11 // pred_region
          %p266 = scmp.lt.s32.totalorder %s28, 0
          %s267 = scalar_select %p266, %s28, 0
          %s268 = smul.u32 16, %s267
          %s270 = ssub.s32 1024, 1024
          %271 = vsyncadd [#allocation4], %s270
          %s272 = smul.addr %s268, 64
          %s273 = scalar_lea.hbm %s1, %s272
          %s274 = sshll.u32 [#allocation3], 4
          %s275 = int_to_ptr.vmem [resolvable:$true] %s274
          %280 = dma.hbm_to_vmem [thread:$0]  %s273, 1024, %s275, [#allocation4], 64, 64, 4
        $region16: #{tpu_custom_call.1} parent=11 // pred_fallthru
          _
        // Predicated region
        $region17: #{tpu_custom_call.1} parent=11 // pred_check
          %p281 = pneg %p154
        $region18: #{tpu_custom_call.1} parent=11 // pred_check_branch
          %283 = sbr.rel (%p281) target = $region20
        $region19: #{tpu_custom_call.1} parent=11 // pred_region
          %p284 = scmp.lt.s32.totalorder %s28, 0
          %s285 = scalar_select %p284, %s28, 0
          %s286 = smul.u32 16, %s285
          %s288 = ssub.s32 1024, 1024
          %289 = vsyncadd [#allocation7], %s288
          %s290 = smul.addr %s286, 64
          %s291 = scalar_lea.hbm %s3, %s290
          %s292 = sshll.u32 [#allocation6], 4
          %s293 = int_to_ptr.vmem [resolvable:$true] %s292
          %298 = dma.hbm_to_vmem [thread:$0]  %s291, 1024, %s293, [#allocation7], 64, 64, 4
        $region20: #{tpu_custom_call.1} parent=11 // pred_fallthru
          _
        // Predicated region
        $region21: #{tpu_custom_call.1} parent=11 // pred_check
          %p299 = pneg %p201
        $region22: #{tpu_custom_call.1} parent=11 // pred_check_branch
          %301 = sbr.rel (%p299) target = $region24
        $region23: #{tpu_custom_call.1} parent=11 // pred_region
          _
        $region24: #{tpu_custom_call.1} parent=11 // pred_fallthru
          _
        // Predicated region
        $region25: #{tpu_custom_call.1} parent=11 // pred_check
          %p302 = pneg %p222
        $region26: #{tpu_custom_call.1} parent=11 // pred_check_branch
          %304 = sbr.rel (%p302) target = $region28
        $region27: #{tpu_custom_call.1} parent=11 // pred_region
          _
        $region28: #{tpu_custom_call.1} parent=11 // pred_fallthru
          _
      $region12: #{tpu_custom_call.1} parent=5 // pred_fallthru
        _
      %p305 = scmp.lt.s32.totalorder %s18, 2
      // Predicated region
      $region29: #{tpu_custom_call.1} parent=5 // pred_check
        %p306 = pneg %p305
      $region30: #{tpu_custom_call.1} parent=5 // pred_check_branch
        %308 = sbr.rel (%p306) target = $region32
      $region31: #{tpu_custom_call.1} parent=5 // pred_region
        // Predicated region
        $region33: #{tpu_custom_call.1} parent=31 // pred_check
          %p309 = pneg %p56
        $region34: #{tpu_custom_call.1} parent=31 // pred_check_branch
          %311 = sbr.rel (%p309) target = $region36
        $region35: #{tpu_custom_call.1} parent=31 // pred_region
          %p312 = scmp.lt.s32.totalorder %s26, 0
          %s313 = scalar_select %p312, %s26, 0
          %p314 = scmp.lt.s32.totalorder %s25, 1
          %s315 = scalar_select %p314, %s25, 1
          %p316 = scmp.lt.s32.totalorder %s313, 0
          %s317 = scalar_select %p316, %s313, 0
          %s318 = sadd.s32 %s317, %s315
          %s319 = smul.addr %s318, 4
          %s320 = scalar_lea.vmem %s0, %s319
          %p321 = scmp.lt.s32.totalorder %s26, 0
          %s322 = scalar_select %p321, %s26, 0
        $region36: #{tpu_custom_call.1} parent=31 // pred_fallthru
          _
        // Predicated region
        $region37: #{tpu_custom_call.1} parent=31 // pred_check
          %p323 = pneg %p118
        $region38: #{tpu_custom_call.1} parent=31 // pred_check_branch
          %325 = sbr.rel (%p323) target = $region40
        $region39: #{tpu_custom_call.1} parent=31 // pred_region
          %p326 = scmp.lt.s32.totalorder %s26, 0
          %s327 = scalar_select %p326, %s26, 0
          %p328 = scmp.lt.s32.totalorder %s25, 1
          %s329 = scalar_select %p328, %s25, 1
          %p330 = scmp.lt.s32.totalorder %s327, 0
          %s331 = scalar_select %p330, %s327, 0
          %s332 = sadd.s32 %s331, %s329
          %s333 = smul.addr %s332, 4
          %s334 = scalar_lea.vmem %s2, %s333
          %p335 = scmp.lt.s32.totalorder %s26, 0
          %s336 = scalar_select %p335, %s26, 0
        $region40: #{tpu_custom_call.1} parent=31 // pred_fallthru
          _
        // Predicated region
        $region41: #{tpu_custom_call.1} parent=31 // pred_check
          %p337 = pneg %p174
        $region42: #{tpu_custom_call.1} parent=31 // pred_check_branch
          %339 = sbr.rel (%p337) target = $region44
        $region43: #{tpu_custom_call.1} parent=31 // pred_region
          %p340 = scmp.lt.s32.totalorder %s25, 1
          %s341 = scalar_select %p340, %s25, 1
          %s342 = smul.addr %s341, 8
          %s343 = scalar_lea.vmem %s4, %s342
        $region44: #{tpu_custom_call.1} parent=31 // pred_fallthru
          _
      $region32: #{tpu_custom_call.1} parent=5 // pred_fallthru
        _
      %p344 = scmp.le.s32.totalorder 1, %s18
      %p345 = scmp.lt.s32.totalorder %s18, 3
      %p346 = pnand %p344, %p345
      %p347 = pneg %p346
      // Predicated region
      $region45: #{tpu_custom_call.1} parent=5 // pred_check
        _
      $region46: #{tpu_custom_call.1} parent=5 // pred_check_branch
        %349 = sbr.rel (%p346) target = $region48
      $region47: #{tpu_custom_call.1} parent=5 // pred_region
        %s350 = ssub.s32 %s18, 1
        // Predicated region
        $region49: #{tpu_custom_call.1} parent=47 // pred_check
          %p351 = pneg %p92
        $region50: #{tpu_custom_call.1} parent=47 // pred_check_branch
          %353 = sbr.rel (%p351) target = $region52
        $region51: #{tpu_custom_call.1} parent=47 // pred_region
          %354 = dma.done [#allocation4], 1024
        $region52: #{tpu_custom_call.1} parent=47 // pred_fallthru
          _
        // Predicated region
        $region53: #{tpu_custom_call.1} parent=47 // pred_check
          %p355 = pneg %p154
        $region54: #{tpu_custom_call.1} parent=47 // pred_check_branch
          %357 = sbr.rel (%p355) target = $region56
        $region55: #{tpu_custom_call.1} parent=47 // pred_region
          %358 = dma.done [#allocation7], 1024
        $region56: #{tpu_custom_call.1} parent=47 // pred_fallthru
          _
        %p359 = scmp.lt.s32.totalorder %s28, 0
        %s360 = scalar_select %p359, %s28, 0
        %p361 = scmp.lt.s32.totalorder %s27, 1
        %s362 = scalar_select %p361, %s27, 1
        %p363 = scmp.lt.s32.totalorder %s360, 0
        %s364 = scalar_select %p363, %s360, 0
        %s365 = sadd.s32 %s364, %s362
        %s366 = smul.addr %s365, 4
        %s367 = scalar_lea.vmem %s0, %s366
        %p368 = pneg %p62
        %p369 = pneg %p59
        %p370 = pneg %p92
        %p371 = pneg %p89
        %p372 = scmp.lt.s32.totalorder %s28, 0
        %s373 = scalar_select %p372, %s28, 0
        %p374 = scmp.lt.s32.totalorder %s27, 1
        %s375 = scalar_select %p374, %s27, 1
        %p376 = scmp.lt.s32.totalorder %s373, 0
        %s377 = scalar_select %p376, %s373, 0
        %s378 = sadd.s32 %s377, %s375
        %s379 = smul.addr %s378, 4
        %s380 = scalar_lea.vmem %s2, %s379
        %p381 = pneg %p124
        %p382 = pneg %p121
        %p383 = pneg %p154
        %p384 = pneg %p151
        %p385 = scmp.lt.s32.totalorder %s27, 1
        %s386 = scalar_select %p385, %s27, 1
        %s387 = smul.addr %s386, 8
        %s388 = scalar_lea.vmem %s4, %s387
        %p389 = pneg %p180
        %p390 = pneg %p177
        %p391 = pneg %p201
        %p392 = pneg %p198
        %p393 = pneg %p222
        %p394 = pneg %p219
        %p395 = pneg %p248
        %p396 = pneg %p245
        %s397 = sand.u32 %s235, 1
        %s398 = scalar_lea.sflag [#allocation5], %s397
        %s399 = sand.u32 %s235, 1
        %s400 = smul.addr %s399, 8
        %s401 = scalar_lea.vmem [#allocation8], %s400
        %p402 = scmp.lt.s32.totalorder %s28, 0
        %s403 = scalar_select %p402, %s28, 0
        %p404 = scmp.lt.s32.totalorder %s27, 1
        %s405 = scalar_select %p404, %s27, 1
        %p406 = scmp.lt.s32.totalorder %s403, 0
        %s407 = scalar_select %p406, %s403, 0
        %s408 = sadd.s32 %s407, %s405
        %s409 = smul.addr %s408, 4
        %s410 = scalar_lea.vmem %s0, %s409
        %p411 = scmp.lt.s32.totalorder %s28, 0
        %s412 = scalar_select %p411, %s28, 0
        %p413 = scmp.lt.s32.totalorder %s28, 0
        %s414 = scalar_select %p413, %s28, 0
        %s415 = smul.u32 16, %s414
        %p416 = scmp.lt.s32.totalorder %s28, 0
        %s417 = scalar_select %p416, %s28, 0
        %p418 = scmp.lt.s32.totalorder %s27, 1
        %s419 = scalar_select %p418, %s27, 1
        %p420 = scmp.lt.s32.totalorder %s417, 0
        %s421 = scalar_select %p420, %s417, 0
        %s422 = sadd.s32 %s421, %s419
        %s423 = smul.addr %s422, 4
        %s424 = scalar_lea.vmem %s2, %s423
        %p425 = scmp.lt.s32.totalorder %s28, 0
        %s426 = scalar_select %p425, %s28, 0
        %p427 = scmp.lt.s32.totalorder %s28, 0
        %s428 = scalar_select %p427, %s28, 0
        %s429 = smul.u32 16, %s428
        %p430 = scmp.lt.s32.totalorder %s27, 1
        %s431 = scalar_select %p430, %s27, 1
        %s432 = smul.addr %s431, 8
        %s433 = scalar_lea.vmem %s4, %s432
        %p435 = scmp.eq.s32.totalorder %s28, 0
        // Predicated region
        $region57: #{tpu_custom_call.1} parent=47 // pred_check
          %p436 = pneg %p435
        $region58: #{tpu_custom_call.1} parent=47 // pred_check_branch
          %438 = sbr.rel (%p436) target = $region60
        $region59: #{tpu_custom_call.1} parent=47 // pred_region
          %439 = vst [vmem:[#allocation2] sm:$0xff] 0.0
        $region60: #{tpu_custom_call.1} parent=47 // pred_fallthru
          _
        %p440 = scmp.lt.s32.totalorder %s28, 1
        // Predicated region
        $region61: #{tpu_custom_call.1} parent=47 // pred_check
          %p441 = pneg %p440
        $region62: #{tpu_custom_call.1} parent=47 // pred_check_branch
          %443 = sbr.rel (%p441) target = $region64
        $region63: #{tpu_custom_call.1} parent=47 // pred_region
          %v444 = vld [vmem:[#allocation2] sm:$0xff]
          %v445 = vld [vmem:[%s410] sm:$0xf]
          %v446 = vld [vmem:[#allocation3] sm:$0xf]
          %v447 = vld [vmem:[#allocation3 + $0x4] sm:$0xf]
          %v448 = vld [vmem:[#allocation3 + $0x8] sm:$0xf]
          %v449 = vld [vmem:[#allocation3 + $0xc] sm:$0xf]
          %v450 = vld [vmem:[#allocation3 + $0x10] sm:$0xf]
          %v451 = vld [vmem:[#allocation3 + $0x14] sm:$0xf]
          %v452 = vld [vmem:[#allocation3 + $0x18] sm:$0xf]
          %v453 = vld [vmem:[#allocation3 + $0x1c] sm:$0xf]
          %v454 = vld [vmem:[#allocation3 + $0x20] sm:$0xf]
          %v455 = vld [vmem:[#allocation3 + $0x24] sm:$0xf]
          %v456 = vld [vmem:[#allocation3 + $0x28] sm:$0xf]
          %v457 = vld [vmem:[#allocation3 + $0x2c] sm:$0xf]
          %v458 = vld [vmem:[#allocation3 + $0x30] sm:$0xf]
          %v459 = vld [vmem:[#allocation3 + $0x34] sm:$0xf]
          %v460 = vld [vmem:[#allocation3 + $0x38] sm:$0xf]
          %v461 = vld [vmem:[#allocation3 + $0x3c] sm:$0xf]
          %v478 = vunpack.c.l.b16 %v446
          %v479 = vunpack.c.l.b16 %v447
          %v480 = vunpack.c.l.b16 %v448
          %v481 = vunpack.c.l.b16 %v449
          %v482 = vunpack.c.l.b16 %v450
          %v483 = vunpack.c.l.b16 %v451
          %v484 = vunpack.c.l.b16 %v452
          %v485 = vunpack.c.l.b16 %v453
          %v486 = vunpack.c.l.b16 %v454
          %v487 = vunpack.c.l.b16 %v455
          %v488 = vunpack.c.l.b16 %v456
          %v489 = vunpack.c.l.b16 %v457
          %v490 = vunpack.c.l.b16 %v458
          %v491 = vunpack.c.l.b16 %v459
          %v492 = vunpack.c.l.b16 %v460
          %v493 = vunpack.c.l.b16 %v461
          %v494 = vpack.c.b16 %v479, %v478
          %v495 = vpack.c.b16 %v481, %v480
          %v496 = vpack.c.b16 %v483, %v482
          %v497 = vpack.c.b16 %v485, %v484
          %v498 = vpack.c.b16 %v487, %v486
          %v499 = vpack.c.b16 %v489, %v488
          %v500 = vpack.c.b16 %v491, %v490
          %v501 = vpack.c.b16 %v493, %v492
          %510 = vmatprep.subr.bf16.mxu0 0
          %511 = vmatpush1.bf16.msra.mxu0 %v494
          %512 = vmatprep.subr.bf16.mxu0 0
          %513 = vmatpush1.bf16.msra.mxu0 %v495
          %514 = vmatprep.subr.bf16.mxu0 0
          %515 = vmatpush1.bf16.msra.mxu0 %v496
          %516 = vmatprep.subr.bf16.mxu0 0
          %517 = vmatpush1.bf16.msra.mxu0 %v497
          %518 = vmatprep.subr.bf16.mxu0 0
          %519 = vmatpush1.bf16.msra.mxu0 %v498
          %520 = vmatprep.subr.bf16.mxu0 0
          %521 = vmatpush1.bf16.msra.mxu0 %v499
          %522 = vmatprep.subr.bf16.mxu0 0
          %523 = vmatpush1.bf16.msra.mxu0 %v500
          %524 = vmatprep.subr.bf16.mxu0 0
          %525 = vmatpush1.bf16.msra.mxu0 %v501
          %526 = vmatprep.subr.bf16.mxu0 0
          %527 = vmatpush1.bf16.msra.mxu0 0
          %528 = vmatprep.subr.bf16.mxu0 0
          %529 = vmatpush1.bf16.msra.mxu0 0
          %530 = vmatprep.subr.bf16.mxu0 0
          %531 = vmatpush1.bf16.msra.mxu0 0
          %532 = vmatprep.subr.bf16.mxu0 0
          %533 = vmatpush1.bf16.msra.mxu0 0
          %534 = vmatprep.subr.bf16.mxu0 0
          %535 = vmatpush1.bf16.msra.mxu0 0
          %536 = vmatprep.subr.bf16.mxu0 0
          %537 = vmatpush1.bf16.msra.mxu0 0
          %538 = vmatprep.subr.bf16.mxu0 0
          %539 = vmatpush1.bf16.msra.mxu0 0
          %540 = vmatprep.subr.bf16.mxu0 0
          %541 = vmatpush1.bf16.msra.mxu0 0
          %542 = vmatprep.mubr.bf16.mxu0 0
          %543 = vmatmul.mubr.bf16.gmra.mrb[0].mxu0 %v445
          %v544 = vpop.f32.mrb[0].mxu0
          %v545 = vadd.f32 0.0, %v544
          %v546 = vpop.f32.mrb[0].mxu0
          %v547 = vpop.f32.mrb[0].mxu0
          %v548 = vpop.f32.mrb[0].mxu0
          %549 = vdwg.mxu0
          %v550 = vadd.f32 %v444, %v545
          %551 = vst [vmem:[#allocation2] sm:$0xff] %v550
          %v552 = vld [vmem:[#allocation2] sm:$0xff]
          %v553 = vld [vmem:[%s424] sm:$0xf]
          %v554 = vld [vmem:[#allocation6] sm:$0xf]
          %v555 = vld [vmem:[#allocation6 + $0x4] sm:$0xf]
          %v556 = vld [vmem:[#allocation6 + $0x8] sm:$0xf]
          %v557 = vld [vmem:[#allocation6 + $0xc] sm:$0xf]
          %v558 = vld [vmem:[#allocation6 + $0x10] sm:$0xf]
          %v559 = vld [vmem:[#allocation6 + $0x14] sm:$0xf]
          %v560 = vld [vmem:[#allocation6 + $0x18] sm:$0xf]
          %v561 = vld [vmem:[#allocation6 + $0x1c] sm:$0xf]
          %v562 = vld [vmem:[#allocation6 + $0x20] sm:$0xf]
          %v563 = vld [vmem:[#allocation6 + $0x24] sm:$0xf]
          %v564 = vld [vmem:[#allocation6 + $0x28] sm:$0xf]
          %v565 = vld [vmem:[#allocation6 + $0x2c] sm:$0xf]
          %v566 = vld [vmem:[#allocation6 + $0x30] sm:$0xf]
          %v567 = vld [vmem:[#allocation6 + $0x34] sm:$0xf]
          %v568 = vld [vmem:[#allocation6 + $0x38] sm:$0xf]
          %v569 = vld [vmem:[#allocation6 + $0x3c] sm:$0xf]
          %v586 = vunpack.c.l.b16 %v554
          %v587 = vunpack.c.l.b16 %v555
          %v588 = vunpack.c.l.b16 %v556
          %v589 = vunpack.c.l.b16 %v557
          %v590 = vunpack.c.l.b16 %v558
          %v591 = vunpack.c.l.b16 %v559
          %v592 = vunpack.c.l.b16 %v560
          %v593 = vunpack.c.l.b16 %v561
          %v594 = vunpack.c.l.b16 %v562
          %v595 = vunpack.c.l.b16 %v563
          %v596 = vunpack.c.l.b16 %v564
          %v597 = vunpack.c.l.b16 %v565
          %v598 = vunpack.c.l.b16 %v566
          %v599 = vunpack.c.l.b16 %v567
          %v600 = vunpack.c.l.b16 %v568
          %v601 = vunpack.c.l.b16 %v569
          %v602 = vpack.c.b16 %v587, %v586
          %v603 = vpack.c.b16 %v589, %v588
          %v604 = vpack.c.b16 %v591, %v590
          %v605 = vpack.c.b16 %v593, %v592
          %v606 = vpack.c.b16 %v595, %v594
          %v607 = vpack.c.b16 %v597, %v596
          %v608 = vpack.c.b16 %v599, %v598
          %v609 = vpack.c.b16 %v601, %v600
          %618 = vmatprep.subr.bf16.mxu0 0
          %619 = vmatpush1.bf16.msra.mxu0 %v602
          %620 = vmatprep.subr.bf16.mxu0 0
          %621 = vmatpush1.bf16.msra.mxu0 %v603
          %622 = vmatprep.subr.bf16.mxu0 0
          %623 = vmatpush1.bf16.msra.mxu0 %v604
          %624 = vmatprep.subr.bf16.mxu0 0
          %625 = vmatpush1.bf16.msra.mxu0 %v605
          %626 = vmatprep.subr.bf16.mxu0 0
          %627 = vmatpush1.bf16.msra.mxu0 %v606
          %628 = vmatprep.subr.bf16.mxu0 0
          %629 = vmatpush1.bf16.msra.mxu0 %v607
          %630 = vmatprep.subr.bf16.mxu0 0
          %631 = vmatpush1.bf16.msra.mxu0 %v608
          %632 = vmatprep.subr.bf16.mxu0 0
          %633 = vmatpush1.bf16.msra.mxu0 %v609
          %634 = vmatprep.subr.bf16.mxu0 0
          %635 = vmatpush1.bf16.msra.mxu0 0
          %636 = vmatprep.subr.bf16.mxu0 0
          %637 = vmatpush1.bf16.msra.mxu0 0
          %638 = vmatprep.subr.bf16.mxu0 0
          %639 = vmatpush1.bf16.msra.mxu0 0
          %640 = vmatprep.subr.bf16.mxu0 0
          %641 = vmatpush1.bf16.msra.mxu0 0
          %642 = vmatprep.subr.bf16.mxu0 0
          %643 = vmatpush1.bf16.msra.mxu0 0
          %644 = vmatprep.subr.bf16.mxu0 0
          %645 = vmatpush1.bf16.msra.mxu0 0
          %646 = vmatprep.subr.bf16.mxu0 0
          %647 = vmatpush1.bf16.msra.mxu0 0
          %648 = vmatprep.subr.bf16.mxu0 0
          %649 = vmatpush1.bf16.msra.mxu0 0
          %650 = vmatprep.mubr.bf16.mxu0 0
          %651 = vmatmul.mubr.bf16.gmra.mrb[0].mxu0 %v553
          %v652 = vpop.f32.mrb[0].mxu0
          %v653 = vadd.f32 0.0, %v652
          %v654 = vpop.f32.mrb[0].mxu0
          %v655 = vpop.f32.mrb[0].mxu0
          %v656 = vpop.f32.mrb[0].mxu0
          %657 = vdwg.mxu0
          %v658 = vadd.f32 %v552, %v653
          %659 = vst [vmem:[#allocation2] sm:$0xff] %v658
        $region64: #{tpu_custom_call.1} parent=47 // pred_fallthru
          _
        // Predicated region
        $region65: #{tpu_custom_call.1} parent=47 // pred_check
          %p660 = pneg %p435
        $region66: #{tpu_custom_call.1} parent=47 // pred_check_branch
          %662 = sbr.rel (%p660) target = $region68
        $region67: #{tpu_custom_call.1} parent=47 // pred_region
          %v663 = vld [vmem:[%s433] sm:$0xff]
          %v664 = vld [vmem:[%s5] sm:$0xff]
          %vm665 = vcmask 64512
          %v667 = vsel %vm665, %v663, 0
          %669 = vmatprep.subr.mxu0 0.0
          %670 = vmatpush1.msra.mxu0 %v664
          %671 = vmatprep.subr.mxu0 0.0
          %672 = vmatpush1.msra.mxu0 0.0
          %673 = vmatprep.subr.mxu0 0.0
          %674 = vmatpush1.msra.mxu0 0.0
          %675 = vmatprep.subr.mxu0 0.0
          %676 = vmatpush1.msra.mxu0 0.0
          %677 = vmatprep.subr.mxu0 0.0
          %678 = vmatpush1.msra.mxu0 0.0
          %679 = vmatprep.subr.mxu0 0.0
          %680 = vmatpush1.msra.mxu0 0.0
          %681 = vmatprep.subr.mxu0 0.0
          %682 = vmatpush1.msra.mxu0 0.0
          %683 = vmatprep.subr.mxu0 0.0
          %684 = vmatpush1.msra.mxu0 0.0
          %685 = vmatprep.subr.mxu0 0.0
          %686 = vmatpush1.msra.mxu0 0.0
          %687 = vmatprep.subr.mxu0 0.0
          %688 = vmatpush1.msra.mxu0 0.0
          %689 = vmatprep.subr.mxu0 0.0
          %690 = vmatpush1.msra.mxu0 0.0
          %691 = vmatprep.subr.mxu0 0.0
          %692 = vmatpush1.msra.mxu0 0.0
          %693 = vmatprep.subr.mxu0 0.0
          %694 = vmatpush1.msra.mxu0 0.0
          %695 = vmatprep.subr.mxu0 0.0
          %696 = vmatpush1.msra.mxu0 0.0
          %697 = vmatprep.subr.mxu0 0.0
          %698 = vmatpush1.msra.mxu0 0.0
          %699 = vmatprep.subr.mxu0 0.0
          %700 = vmatpush1.msra.mxu0 0.0
          %701 = vmatprep.subr.mxu0 0.0
          %702 = vmatpush1.msra.mxu0 0.0
          %703 = vmatprep.subr.mxu0 0.0
          %704 = vmatpush1.msra.mxu0 0.0
          %705 = vmatprep.subr.mxu0 0.0
          %706 = vmatpush1.msra.mxu0 0.0
          %707 = vmatprep.subr.mxu0 0.0
          %708 = vmatpush1.msra.mxu0 0.0
          %709 = vmatprep.subr.mxu0 0.0
          %710 = vmatpush1.msra.mxu0 0.0
          %711 = vmatprep.subr.mxu0 0.0
          %712 = vmatpush1.msra.mxu0 0.0
          %713 = vmatprep.subr.mxu0 0.0
          %714 = vmatpush1.msra.mxu0 0.0
          %715 = vmatprep.subr.mxu0 0.0
          %716 = vmatpush1.msra.mxu0 0.0
          %717 = vmatprep.subr.mxu0 0.0
          %718 = vmatpush1.msra.mxu0 0.0
          %719 = vmatprep.subr.mxu0 0.0
          %720 = vmatpush1.msra.mxu0 0.0
          %721 = vmatprep.subr.mxu0 0.0
          %722 = vmatpush1.msra.mxu0 0.0
          %723 = vmatprep.subr.mxu0 0.0
          %724 = vmatpush1.msra.mxu0 0.0
          %725 = vmatprep.subr.mxu0 0.0
          %726 = vmatpush1.msra.mxu0 0.0
          %727 = vmatprep.subr.mxu0 0.0
          %728 = vmatpush1.msra.mxu0 0.0
          %729 = vmatprep.subr.mxu0 0.0
          %730 = vmatpush1.msra.mxu0 0.0
          %731 = vmatprep.subr.mxu0 0.0
          %732 = vmatpush1.msra.mxu0 0.0
          %733 = vmatprep.mubr.f32.mxu0 0.0
          %734 = vmatmul.mubr.f32.gmra.mrb[0].mxu0 %v667
          %v735 = vpop.f32.mrb[0].mxu0
          %v736 = vadd.f32 0.0, %v735
          %v737 = vpop.f32.mrb[0].mxu0
          %738 = vdwg.mxu0
          %v739 = vld [vmem:[#allocation2] sm:$0xff]
          %v740 = vadd.f32 %v739, %v736
          %v741 = vld [vmem:[%s6] sm:$0x1]
          %v743 = vlaneseq
          %v744 = vshrl.u32 %v743, 7
          %v745 = vsub.s32 0, %v744
          %v746 = vrot.slane %v741, %v745
          %v748 = vadd.f32 %v740, %v746
          %749 = vst [vmem:[%s401] sm:$0xff] %v748
        $region68: #{tpu_custom_call.1} parent=47 // pred_fallthru
          _
        %s750 = sand.u32 %s235, 1
        %s751 = scalar_lea.sflag [#allocation5], %s750
        %s752 = sand.u32 %s235, 1
        %s753 = smul.addr %s752, 8
        %s754 = scalar_lea.vmem [#allocation8], %s753
        // Predicated region
        $region69: #{tpu_custom_call.1} parent=47 // pred_check
          %p755 = pneg %p245
        $region70: #{tpu_custom_call.1} parent=47 // pred_check_branch
          %757 = sbr.rel (%p755) target = $region72
        $region71: #{tpu_custom_call.1} parent=47 // pred_region
          %s759 = ssub.s32 128, 128
          %760 = vsyncadd %s751, %s759
          %s761 = smul.addr %s27, 128
          %s762 = scalar_lea.hbm %s7, %s761
          %s764 = sshll.u32 %s754, 4
          %s765 = int_to_ptr.vmem [resolvable:$true] %s764
          %767 = dma.vmem_to_hbm [thread:$0]  %s765, 128, %s762, %s751
        $region72: #{tpu_custom_call.1} parent=47 // pred_fallthru
          _
      $region48: #{tpu_custom_call.1} parent=5 // pred_fallthru
        _
      %p768 = scmp.le.s32.totalorder 2, %s18
      // Predicated region
      $region73: #{tpu_custom_call.1} parent=5 // pred_check
        %p769 = pneg %p768
      $region74: #{tpu_custom_call.1} parent=5 // pred_check_branch
        %771 = sbr.rel (%p769) target = $region76
      $region75: #{tpu_custom_call.1} parent=5 // pred_region
        %s772 = ssub.s32 %s18, 2
        // Predicated region
        $region77: #{tpu_custom_call.1} parent=75 // pred_check
          %p773 = pneg %p251
        $region78: #{tpu_custom_call.1} parent=75 // pred_check_branch
          %775 = sbr.rel (%p773) target = $region80
        $region79: #{tpu_custom_call.1} parent=75 // pred_region
          %s776 = sand.u32 %s236, 1
          %s777 = scalar_lea.sflag [#allocation5], %s776
          %s778 = sand.u32 %s236, 1
          %s779 = smul.addr %s778, 8
          %s780 = scalar_lea.vmem [#allocation8], %s779
          %781 = dma.done %s777, 128
        $region80: #{tpu_custom_call.1} parent=75 // pred_fallthru
          _
      $region76: #{tpu_custom_call.1} parent=5 // pred_fallthru
        _
    $region6: #{tpu_custom_call.1} parent=1 // loop_footer
      %s22 = sadd.s32 1, %s18
    $region7: #{tpu_custom_call.1} parent=1 // loop_footer_branch
      %17 = sbr.rel target = $region3
    $region8: #{tpu_custom_call.1} parent=1 // loop_exit
      _
    %782 = vsyncpa [#allocation4], 1
    %s783 = scalar_lea.sflag [#allocation4], 1
    %784 = vsyncpa %s783, 1
    %785 = vsyncpa [#allocation7], 1
    %786 = vsyncpa [#allocation5], 1
    %s787 = scalar_lea.sflag [#allocation5], 1
    %788 = vsyncpa %s787, 1

</llo_original>
